<compile_context>
chip_gen: v5e
topology: v5e:2x2
jax: 0.10.0
libtpu: 0.0.40
codegen_flags: <defaults>
</compile_context>

<pallas_src>
import jax
import jax.numpy as jnp
from jax.experimental import pallas as pl
from jax.experimental.pallas import tpu as pltpu


def _round_up(a: int, m: int) -> int:
    return -(-a // m) * m


def _cdiv(a: int, m: int) -> int:
    return -(-a // m)


def _bias_add_kernel(x_ref, b_ref, o_ref):
    # x_ref, o_ref: (row_tile, lane_tile)
    # b_ref:        (row_tile, 1)  -> broadcasts across the lane (spatial) axis
    o_ref[...] = x_ref[...] + b_ref[...]


def learnable_bias_forward(x_nchw: jax.Array, bias_1c11: jax.Array,
                           *, donate_x: bool = False) -> jax.Array:
    """out = x + bias  (per-channel learnable bias, ReActNet LearnableBias)."""
    N, C, H, W = x_nchw.shape
    HW = H * W
    ROWS = N * C
    dtype = x_nchw.dtype
    itemsize = jnp.dtype(dtype).itemsize
    # Sublane quantum: 8 rows for 4-byte, 16 for 2-byte, 32 for 1-byte dtypes.
    sub = max(8, 32 // max(itemsize, 1))

    # Per-tile byte budget (4 MiB): amortizes fixed per-step overhead on
    # v6e/v7x; 4 double-buffered tiles = 16 MiB + bias + headroom.
    TILE_BUDGET = 4 << 20

    # ---- lane tile: prefer the full HW dim (one contiguous HBM slab per row
    # tile, no lane padding branch, lane-dense unmasked stores).  Only split
    # when even a single sublane-quantum of full-HW rows exceeds the budget.
    if sub * HW * itemsize <= TILE_BUDGET:
        lane_tile = HW                       # block dim == full array dim
    else:
        lane_tile = max(128, (TILE_BUDGET // (sub * itemsize)) // 128 * 128)

    # ---- row tile: multiple of the sublane quantum, fill the tile budget ----
    row_budget = max(sub, (TILE_BUDGET // (lane_tile * itemsize)) // sub * sub)
    row_tile = min(_round_up(ROWS, sub), row_budget)

    # Megacore: for bandwidth-limited sizes make sure a "parallel" axis has
    # >= 2 blocks so both v7x TensorCores get work.
    total_bytes = ROWS * HW * itemsize
    lane_blocks = _cdiv(HW, lane_tile)
    if total_bytes >= (2 << 20) and lane_blocks < 2:
        half = _round_up(_cdiv(ROWS, 2), sub)
        if _cdiv(ROWS, half) >= 2:
            row_tile = min(row_tile, half)

    grid = (_cdiv(ROWS, row_tile), _cdiv(HW, lane_tile))

    # Free reshape of contiguous NCHW; no host-side padding (overhanging edge
    # blocks are handled by Pallas: garbage input lanes/rows are read but the
    # corresponding output region is never stored).
    x2 = x_nchw.reshape(ROWS, HW)

    # Per-(batch, channel)-row bias column (tiny: N*C elements).
    # NOTE: cast to x's dtype; PyTorch would promote bf16 x + f32 bias to f32.
    b2 = jnp.tile(bias_1c11.reshape(C).astype(dtype), N).reshape(ROWS, 1)

    tile_bytes = row_tile * lane_tile * itemsize
    bias_tile_bytes = row_tile * 128 * itemsize          # lane-padded estimate
    # 2 double-buffered input tiles + 2 output tiles + bias, plus headroom.
    vmem_limit = int(4 * tile_bytes + 2 * bias_tile_bytes + (8 << 20))

    out2 = pl.pallas_call(
        _bias_add_kernel,
        out_shape=jax.ShapeDtypeStruct((ROWS, HW), dtype),
        grid_spec=pltpu.PrefetchScalarGridSpec(
            num_scalar_prefetch=0,
            grid=grid,
            in_specs=[
                pl.BlockSpec((row_tile, lane_tile), lambda r, h: (r, h)),
                # Constant along the fast lane axis -> bias tile stays
                # resident; only re-fetched when the row block changes.
                pl.BlockSpec((row_tile, 1), lambda r, h: (r, 0)),
            ],
            out_specs=pl.BlockSpec((row_tile, lane_tile), lambda r, h: (r, h)),
        ),
        compiler_params=pltpu.CompilerParams(
            dimension_semantics=("parallel", "parallel"),
            vmem_limit_bytes=vmem_limit,
        ),
        cost_estimate=pl.CostEstimate(
            flops=ROWS * HW,
            transcendentals=0,
            bytes_accessed=(2 * ROWS * HW + ROWS) * itemsize,
        ),
        # Optional footprint/copy-elision win when the caller donates x.
        input_output_aliases=({0: 0} if donate_x else {}),
    )(x2, b2)

    return out2.reshape(N, C, H, W)


if __name__ == "__main__":
    key = jax.random.PRNGKey(0)
    kx, kb, kx2, kb2 = jax.random.split(key, 4)

    # Case 1: canonical small NCHW activation (2, 4, 16, 16).
    N, C, H, W = 2, 4, 16, 16
    x = jax.random.normal(kx, (N, C, H, W), dtype=jnp.float32)
    # nn.Parameter(torch.zeros(1, out_chn, 1, 1)) is zeros at init; use a
    # deterministic nonzero bias so the kernel is actually exercised.
    bias = 0.1 * jax.random.normal(kb, (1, C, 1, 1), dtype=jnp.float32)
    out = jax.block_until_ready(learnable_bias_forward(x, bias))
    ref = x + bias
    assert out.shape == x.shape
    assert jnp.allclose(out, ref, atol=1e-6, rtol=1e-6), "case 1 mismatch"

    # Case 2: non-128-aligned spatial (14x14) + non-multiple-of-8 row count
    # to exercise the overhanging (masked) edge-block path with no padding.
    N2, C2, H2, W2 = 1, 5, 14, 14
    x_b = jax.random.normal(kx2, (N2, C2, H2, W2), dtype=jnp.float32)
    bias_b = 0.1 * jax.random.normal(kb2, (1, C2, 1, 1), dtype=jnp.float32)
    out_b = jax.block_until_ready(learnable_bias_forward(x_b, bias_b))
    ref_b = x_b + bias_b
    assert out_b.shape == x_b.shape
    assert jnp.allclose(out_b, ref_b, atol=1e-6, rtol=1e-6), "case 2 mismatch"

    print("KERNEL_OK")
</pallas_src>

<mosaic_0001>
module attributes {stable_mosaic.version = 11 : i64} {
  func.func @_bias_add_kernel(%arg0: i32, %arg1: i32, %arg2: memref<8x256xf32, #tpu.memory_space<vmem>>, %arg3: memref<8x1xf32, #tpu.memory_space<vmem>>, %arg4: memref<8x256xf32, #tpu.memory_space<vmem>>) attributes {dimension_semantics = [#tpu.dimension_semantics<parallel>, #tpu.dimension_semantics<parallel>], iteration_bounds = array<i64: 1, 1>, scalar_prefetch = 0 : i64, scratch_operands = 0 : i64, tpu.core_type = #tpu.core_type<tc>, window_params = [{transform_indices = @transform_0, window_bounds = array<i64: 8, 256>}, {transform_indices = @transform_1, window_bounds = array<i64: 8, 1>}, {transform_indices = @transform_2, window_bounds = array<i64: 8, 256>}]} {
    %c0 = arith.constant 0 : index
    %c0_0 = arith.constant 0 : index
    %0 = vector.load %arg2[%c0, %c0_0] : memref<8x256xf32, #tpu.memory_space<vmem>>, vector<8x256xf32>
    %c0_1 = arith.constant 0 : index
    %c0_2 = arith.constant 0 : index
    %1 = vector.load %arg3[%c0_1, %c0_2] : memref<8x1xf32, #tpu.memory_space<vmem>>, vector<8x1xf32>
    %2 = vector.broadcast %1 : vector<8x1xf32> to vector<8x256xf32>
    %3 = arith.addf %0, %2 : vector<8x256xf32>
    %c0_3 = arith.constant 0 : index
    %c0_4 = arith.constant 0 : index
    %4 = vector.load %arg4[%c0_3, %c0_4] : memref<8x256xf32, #tpu.memory_space<vmem>>, vector<8x256xf32>
    tpu.vector_store %arg4[%c0_3, %c0_4], %3 {strides = array<i32>} : memref<8x256xf32, #tpu.memory_space<vmem>>, vector<8x256xf32>,
    return
  }
  func.func @transform_0(%arg0: i32, %arg1: i32) -> (i32, i32) {
    %c0_i32 = arith.constant 0 : i32
    return %arg0, %arg1 : i32, i32
  }
  func.func @transform_1(%arg0: i32, %arg1: i32) -> (i32, i32) {
    %c0_i32 = arith.constant 0 : i32
    %c0_i32_0 = arith.constant 0 : i32
    return %arg0, %c0_i32 : i32, i32
  }
  func.func @transform_2(%arg0: i32, %arg1: i32) -> (i32, i32) {
    %c0_i32 = arith.constant 0 : i32
    return %arg0, %arg1 : i32, i32
  }
}

</mosaic_0001>

<llo_original>
// kernel: tpu_custom_call.1
$region0: #{tpu_custom_call.1}
  #allocation0 [shape = 'u32[]', space=smem, size = 0x4, offset = 0x4, fixed_abs, tag = 'smem constant byte address 0x4 - core index']
  #allocation1 [shape = 'u32[72,128]{1,0:T(1,128)}', space=vmem, size = 0x9000, scoped, tag = 'internal scratch']
  %s0 = inlined_call_operand.hbm [shape: f32[8,256], index: 0, kind: input, shape index: {}]
  %s1 = inlined_call_operand.vmem [shape: f32[8,1], index: 1, kind: input, shape index: {}]
  %s2 = inlined_call_operand.hbm [shape: f32[8,256], index: 2, kind: output, shape index: {}]
  %s3 = sld [smem:[#allocation0]]
  $region22: #{tpu_custom_call.1} parent=0
    _
  %s5 = ssub.s32 1, %s3
  %s6 = scalar_select 0, %s5, %s3
  $region1: #{tpu_custom_call.1} parent=0
    #allocation2 [shape = 'u8[8192]{0}', space=vmem, size = 0x2000, scoped, tag = 'input window, operand 0, single buffered']
    #allocation3 [shape = 's32[1]{0}', space=sflag, size = 0x4, scoped, tag = 'scoped memory for tpu_custom_call.1']
    #allocation4 [shape = 's32[1]{0}', space=sflag, size = 0x4, scoped, tag = 'scoped memory for tpu_custom_call.1']
    #allocation5 [shape = 'u8[8192]{0}', space=vmem, size = 0x2000, scoped, tag = 'output window, operand 0, single buffered']
    %7 = vsyncpa [#allocation3], 0
    %8 = vsyncpa [#allocation4], 0
    // Predicated region
    $region2: #{tpu_custom_call.1} parent=1 // pred_check
      _
    $region3: #{tpu_custom_call.1} parent=1 // pred_check_branch
      %10 = sbr.rel (0) target = $region5
    $region4: #{tpu_custom_call.1} parent=1 // pred_region
      %12 = vsyncadd [#allocation3], 0
      %s14 = sshll.u32 %s0, 4
      %s15 = int_to_ptr.hbm [resolvable:$true] %s14
      %s16 = sshll.u32 [#allocation2], 4
      %s17 = int_to_ptr.vmem [resolvable:$true] %s16
      %19 = dma.hbm_to_vmem [thread:$0]  %s15, 256, %s17, [#allocation3]
    $region5: #{tpu_custom_call.1} parent=1 // pred_fallthru
      _
    // Predicated region
    $region6: #{tpu_custom_call.1} parent=1 // pred_check
      _
    $region7: #{tpu_custom_call.1} parent=1 // pred_check_branch
      %21 = sbr.rel (0) target = $region9
    $region8: #{tpu_custom_call.1} parent=1 // pred_region
      _
    $region9: #{tpu_custom_call.1} parent=1 // pred_fallthru
      _
    // Predicated region
    $region10: #{tpu_custom_call.1} parent=1 // pred_check
      _
    $region11: #{tpu_custom_call.1} parent=1 // pred_check_branch
      %23 = sbr.rel (0) target = $region13
    $region12: #{tpu_custom_call.1} parent=1 // pred_region
      %25 = dma.done [#allocation3], 256
    $region13: #{tpu_custom_call.1} parent=1 // pred_fallthru
      _
    %v26 = vld [vmem:[#allocation2] sm:$0xff]
    %v27 = vld [vmem:[#allocation2 + $0x8] sm:$0xff]
    %v28 = vld [vmem:[%s1] sm:$0xff]
    %30 = vset.pattern.permute.xlu0 0
    %31 = vperm.xlu0 %30, %v28
    %v32 = vpop.permute.xlu0 %31
    %v34 = vadd.f32 %v26, %v32
    %v35 = vadd.f32 %v27, %v32
    %36 = vst [vmem:[#allocation5] sm:$0xff] %v34
    %37 = vst [vmem:[#allocation5 + $0x8] sm:$0xff] %v35
    // Predicated region
    $region14: #{tpu_custom_call.1} parent=1 // pred_check
      _
    $region15: #{tpu_custom_call.1} parent=1 // pred_check_branch
      %39 = sbr.rel (0) target = $region17
    $region16: #{tpu_custom_call.1} parent=1 // pred_region
      %41 = vsyncadd [#allocation4], 0
      %s43 = sshll.u32 [#allocation5], 4
      %s44 = int_to_ptr.vmem [resolvable:$true] %s43
      %s45 = sshll.u32 %s2, 4
      %s46 = int_to_ptr.hbm [resolvable:$true] %s45
      %48 = dma.vmem_to_hbm [thread:$0]  %s44, 256, %s46, [#allocation4]
    $region17: #{tpu_custom_call.1} parent=1 // pred_fallthru
      _
    // Predicated region
    $region18: #{tpu_custom_call.1} parent=1 // pred_check
      _
    $region19: #{tpu_custom_call.1} parent=1 // pred_check_branch
      %50 = sbr.rel (0) target = $region21
    $region20: #{tpu_custom_call.1} parent=1 // pred_region
      %52 = dma.done [#allocation4], 256
    $region21: #{tpu_custom_call.1} parent=1 // pred_fallthru
      _
    %53 = vsyncpa [#allocation3], 1
    %54 = vsyncpa [#allocation4], 1

</llo_original>
